<compile_context>
chip_gen: v7x
topology: tpu7x:2x2x1
jax: 0.10.0
libtpu: 0.0.40
codegen_flags: <defaults>
</compile_context>

<pallas_src>
import math

import jax
import jax.numpy as jnp
import numpy as np
from jax.experimental import pallas as pl
from jax.experimental.pallas import tpu as pltpu


# ----------------------------------------------------------------------------
# Fused kernel: all PointNet layers for one tile of tb batch elements
# ----------------------------------------------------------------------------
def _make_fused_kernel(depths, tb, n):
    """depths[i] = number of Linear layers inside PointNet layer i's Dense."""
    n_layers = len(depths)
    rows = tb * n

    def kernel(*refs):
        x_ref = refs[0]          # (tb*n, d_in)  f32
        out_ref = refs[-1]       # (tb, d_out)
        w = refs[1:-1]           # weight/bias refs; loaded at use site (bounds live ranges)

        # ---- layer 0: plain MLP over all tb*n points -------------------------
        h = x_ref[...]                                   # f32
        idx = 0
        for j in range(depths[0]):
            wj = w[idx][...]                             # bf16 weight
            bj = w[idx + 1][...]                         # f32 bias (1, out)
            h = jnp.dot(h.astype(jnp.bfloat16), wj,
                        preferred_element_type=jnp.float32) + bj
            idx += 2
            if j != depths[0] - 1:                       # ReLU on hidden layers only
                h = jnp.maximum(h, 0.0)
        local = h                                        # (rows, d0) f32, VMEM-only
        glob = jnp.max(local.reshape(tb, n, -1), axis=1)  # 'max' pool -> (tb, d0)

        # ---- layers 1..L-1: concat([local, broadcast(glob)]) folded into
        #      split-weight matmuls (no (tb, n, 2*d0) intermediate) -------------
        for li in range(1, n_layers):
            w_loc = w[idx][...]                          # bf16 (d_prev, h1)
            w_glb = w[idx + 1][...]                      # bf16 (d_prev, h1)
            b0 = w[idx + 2][...]                         # f32  (1, h1)
            idx += 3
            part_l = jnp.dot(local.astype(jnp.bfloat16), w_loc,
                             preferred_element_type=jnp.float32)   # (rows, h1)
            part_g = jnp.dot(glob.astype(jnp.bfloat16), w_glb,
                             preferred_element_type=jnp.float32)   # (tb, h1)
            h3 = part_l.reshape(tb, n, -1) + part_g[:, None, :] + b0
            if depths[li] > 1:                           # first linear is hidden -> ReLU
                h3 = jnp.maximum(h3, 0.0)
            h = h3.reshape(rows, h3.shape[-1])
            for j in range(1, depths[li]):
                wj = w[idx][...]
                bj = w[idx + 1][...]
                h = jnp.dot(h.astype(jnp.bfloat16), wj,
                            preferred_element_type=jnp.float32) + bj
                idx += 2
                if j != depths[li] - 1:
                    h = jnp.maximum(h, 0.0)
            local = h
            glob = jnp.max(local.reshape(tb, n, -1), axis=1)

        out_ref[...] = glob.astype(out_ref.dtype)        # (tb, d_out)

    return kernel


# ----------------------------------------------------------------------------
# Generation-aware tiling (padded-byte VMEM accounting)
# ----------------------------------------------------------------------------
# Per point-row live set at peak, using lane-padded (->128) bytes:
#   double-buffered f32 input tile (~1 KiB) + ~4-5 live (rows, 128-pad) f32
#   intermediates (~2.5 KiB) + bf16 matmul casts (~0.5 KiB)  ->  ~4 KiB / row.
_PADDED_BYTES_PER_ROW = 4096
_FIXED_SLACK_BYTES = 4 << 20       # weights, semaphores, compiler scratch


def _tpu_vmem_and_cores():
    vmem_cap = 64 << 20            # conservative fallback = v7x (smallest VMEM)
    num_cores = 1                  # conservative fallback = single TensorCore
    try:
        info = pltpu.get_tpu_info()
        vmem_cap = int(getattr(info, "vmem_capacity_bytes", vmem_cap))
        for name in ("num_tensorcores", "tensorcore_count", "num_cores", "core_count"):
            v = getattr(info, name, None)
            if v:
                num_cores = int(v)
                break
    except Exception:
        pass
    return vmem_cap, num_cores


def _choose_tiling(B, n, rows_per_step=None):
    vmem_cap, num_cores = _tpu_vmem_and_cores()
    # ~48 MiB on v7x (64 MiB physical), ~96 MiB on v5e/v6e (128 MiB physical).
    vmem_limit = min(vmem_cap * 3 // 4, 112 << 20)
    budget = max(1 << 20, vmem_limit - _FIXED_SLACK_BYTES)
    rows_cap = max(n, (budget // _PADDED_BYTES_PER_ROW) // 8 * 8)
    if rows_per_step is not None:
        rows_cap = max(n, min(rows_cap, rows_per_step))
    tb_cap = max(1, rows_cap // n)

    num_steps = -(-B // tb_cap)                      # ceil(B / tb_cap)
    if num_cores >= 2 and B >= 2:
        # Megacore chips (v7x): keep the grid length a multiple of the core count
        # so dimension_semantics=('parallel',) splits work evenly.
        num_steps = max(num_steps, num_cores)
        num_steps = -(-num_steps // num_cores) * num_cores
    # Single-TC chips (v5e/v6e): no forced splitting -> one maximal step if it fits.

    tb = -(-B // num_steps)
    if num_steps > 1:
        tb = -(-tb // 8) * 8       # sublane alignment for the (tb, d_out) out block
    B_pad = tb * num_steps
    return tb, num_steps, B_pad, vmem_limit


# ----------------------------------------------------------------------------
# MultiLayerPointNet forward (use_local_features=True, mask=None, 'max' pooling)
# ----------------------------------------------------------------------------
def multilayer_pointnet(x, params_list, *, rows_per_step=None):
    """x: (B, n, d_in). Returns pooled global features (B, 1, output_dims[-1])."""
    B, n, d_in = x.shape
    # TODO(synk): n not a multiple of 8 would make the in-kernel 2D<->3D reshapes a
    # relayout and needs -inf point padding for the max-pool; not implemented.
    assert n % 8 == 0, "point count n must be a multiple of 8"

    n_layers = len(params_list)
    depths = [len(p) // 2 for p in params_list]
    d_out = params_list[-1][-2].shape[1]

    # Flatten params; matmul weights -> bf16, biases stay f32.  For layers >= 1 the
    # first weight is split into local-feature / global-feature halves (replaces cat).
    flat = []
    p0 = list(params_list[0])
    for j in range(depths[0]):
        flat.append(p0[2 * j].astype(jnp.bfloat16))
        flat.append(p0[2 * j + 1].astype(jnp.float32))
    for i in range(1, n_layers):
        p = list(params_list[i])
        d_prev = params_list[i - 1][-2].shape[1]
        flat.append(p[0][:d_prev, :].astype(jnp.bfloat16))
        flat.append(p[0][d_prev:, :].astype(jnp.bfloat16))
        flat.append(p[1].astype(jnp.float32))
        for j in range(1, depths[i]):
            flat.append(p[2 * j].astype(jnp.bfloat16))
            flat.append(p[2 * j + 1].astype(jnp.float32))

    tb, num_steps, B_pad, vmem_limit = _choose_tiling(B, n, rows_per_step)

    # 2-D dataflow: (B*n, d_in) input, (B_pad, d_out) output.  Pad batch with zero
    # rows if ceil-div padding is needed; the point axis is never tiled, so pad rows
    # only affect the discarded pad outputs.
    x2d = x.reshape(B * n, d_in).astype(jnp.float32)
    if B_pad > B:
        x2d = jnp.pad(x2d, ((0, (B_pad - B) * n), (0, 0)))

    def const_spec(arr):
        nd = arr.ndim
        # Constant-index full-array block: fetched into VMEM once for the call.
        return pl.BlockSpec(arr.shape, lambda b, _nd=nd: (0,) * _nd)

    in_specs = [pl.BlockSpec((tb * n, d_in), lambda b: (b, 0))]
    in_specs += [const_spec(a) for a in flat]

    out2d = pl.pallas_call(
        _make_fused_kernel(tuple(depths), tb, n),
        out_shape=jax.ShapeDtypeStruct((B_pad, d_out), x.dtype),
        grid_spec=pltpu.PrefetchScalarGridSpec(
            num_scalar_prefetch=0,
            grid=(num_steps,),
            in_specs=in_specs,
            out_specs=pl.BlockSpec((tb, d_out), lambda b: (b, 0)),
        ),
        compiler_params=pltpu.CompilerParams(
            dimension_semantics=("parallel",),
            vmem_limit_bytes=vmem_limit),
    )(x2d, *flat)

    # keepdim=True final output (B, 1, d_out)
    return out2d[:B].reshape(B, 1, d_out)
    # TODO(synk): transposed (features-on-sublanes) dataflow for lane-dense vregs is
    # the remaining structural upside; not implemented in this revision.


# ----------------------------------------------------------------------------
# Deterministic parameter initialization (kaiming-uniform-like)
# ----------------------------------------------------------------------------
def _kaiming_uniform(key, fan_in, fan_out, gain):
    bound = gain * math.sqrt(3.0 / fan_in)
    # stored as (in, out) so the kernel computes x @ W (== x @ W_torch.T)
    return jax.random.uniform(key, (fan_in, fan_out), jnp.float32,
                              minval=-bound, maxval=bound)


def init_dense_params(key, input_dim, hidden_dims, output_dim):
    widths = [input_dim] + list(hidden_dims) + [output_dim]
    n_layers = len(widths) - 1
    keys = jax.random.split(key, 2 * n_layers)
    params = []
    for i in range(n_layers):
        in_d, out_d = widths[i], widths[i + 1]
        is_last = (i == n_layers - 1)
        gain = 1.0 if is_last else math.sqrt(2.0)  # 'linear' at end, 'relu' before
        w = _kaiming_uniform(keys[2 * i], in_d, out_d, gain)
        # Module init zeros biases; use small random biases here to exercise the
        # bias-broadcast path in the kernel.
        b = 0.1 * jax.random.normal(keys[2 * i + 1], (1, out_d), jnp.float32)
        params.extend([w, b])
    return tuple(params)


# ----------------------------------------------------------------------------
# Pure-JAX f32 reference (explicit concat path) for correctness checking
# ----------------------------------------------------------------------------
def _reference(x, params_list):
    def layer(xi, p):
        w1, b1, w2, b2, w3, b3 = p
        h = jnp.maximum(xi @ w1 + b1, 0.0)
        h = jnp.maximum(h @ w2 + b2, 0.0)
        local = h @ w3 + b3
        glob = jnp.max(local, axis=-2, keepdims=True)
        return glob, local

    glob, local = layer(x, params_list[0])
    n = x.shape[-2]
    for i in range(1, len(params_list)):
        eg = jnp.broadcast_to(glob, glob.shape[:-2] + (n, glob.shape[-1]))
        glob, local = layer(jnp.concatenate([local, eg], axis=-1), params_list[i])
    return glob


if __name__ == "__main__":
    # Small shapes consistent with the module's forward: x is (*, n, input_dim)
    n, input_dim = 8, 4
    hidden_dims = [[32, 32], [32, 32]]
    output_dims = [32, 32]
    # use_local_features=True -> layer-1 input dim = output_dims[0] * 2 = 64

    key = jax.random.PRNGKey(0)
    kx, k0, k1, kx2, kx3 = jax.random.split(key, 5)
    params_list = [
        init_dense_params(k0, input_dim, hidden_dims[0], output_dims[0]),
        init_dense_params(k1, output_dims[0] * 2, hidden_dims[1], output_dims[1]),
    ]

    # bf16 MXU matmuls vs. the f32 reference -> intentionally relaxed tolerance.
    TOL = dict(rtol=5e-2, atol=5e-2)

    # 1) single-step grid (whole batch in one maximal tile)
    B = 8
    x = jax.random.normal(kx, (B, n, input_dim), jnp.float32)
    out = jax.block_until_ready(multilayer_pointnet(x, params_list))
    ref = jax.block_until_ready(_reference(x, params_list))
    assert out.shape == (B, 1, output_dims[-1]), out.shape
    np.testing.assert_allclose(np.asarray(out), np.asarray(ref), **TOL)

    # 2) multi-step grid (rows_per_step override forces 4 grid steps, no padding)
    B2 = 32
    x2 = jax.random.normal(kx2, (B2, n, input_dim), jnp.float32)
    out2 = jax.block_until_ready(multilayer_pointnet(x2, params_list, rows_per_step=64))
    ref2 = jax.block_until_ready(_reference(x2, params_list))
    np.testing.assert_allclose(np.asarray(out2), np.asarray(ref2), **TOL)

    # 3) ceil-div grid with pad batch rows (B not a multiple of the tile)
    B3 = 10
    x3 = jax.random.normal(kx3, (B3, n, input_dim), jnp.float32)
    out3 = jax.block_until_ready(multilayer_pointnet(x3, params_list, rows_per_step=32))
    ref3 = jax.block_until_ready(_reference(x3, params_list))
    np.testing.assert_allclose(np.asarray(out3), np.asarray(ref3), **TOL)

    # TODO(synk): mask handling and 'mean'/'sum'/'fatmax'/experiment* pooling paths
    # (plus layernorm/dropout Dense variants, use_local_features=False) are not
    # implemented; only the default mask=None + 'max' + use_local_features=True
    # forward is exercised.
    print("KERNEL_OK")
</pallas_src>

<mosaic_0001>
module attributes {stable_mosaic.version = 11 : i64} {
  func.func @kernel(%arg0: i32, %arg1: memref<64x4xf32, #tpu.memory_space<vmem>>, %arg2: memref<4x32xbf16, #tpu.memory_space<vmem>>, %arg3: memref<1x32xf32, #tpu.memory_space<vmem>>, %arg4: memref<32x32xbf16, #tpu.memory_space<vmem>>, %arg5: memref<1x32xf32, #tpu.memory_space<vmem>>, %arg6: memref<32x32xbf16, #tpu.memory_space<vmem>>, %arg7: memref<1x32xf32, #tpu.memory_space<vmem>>, %arg8: memref<32x32xbf16, #tpu.memory_space<vmem>>, %arg9: memref<32x32xbf16, #tpu.memory_space<vmem>>, %arg10: memref<1x32xf32, #tpu.memory_space<vmem>>, %arg11: memref<32x32xbf16, #tpu.memory_space<vmem>>, %arg12: memref<1x32xf32, #tpu.memory_space<vmem>>, %arg13: memref<32x32xbf16, #tpu.memory_space<vmem>>, %arg14: memref<1x32xf32, #tpu.memory_space<vmem>>, %arg15: memref<8x32xf32, #tpu.memory_space<vmem>>) attributes {dimension_semantics = [#tpu.dimension_semantics<parallel>], iteration_bounds = array<i64: 1>, scalar_prefetch = 0 : i64, scratch_operands = 0 : i64, tpu.core_type = #tpu.core_type<tc>, window_params = [{transform_indices = @transform_0, window_bounds = array<i64: 64, 4>}, {pipeline_mode = #tpu.pipeline_mode<synchronous>, transform_indices = @transform_1, window_bounds = array<i64: 4, 32>}, {pipeline_mode = #tpu.pipeline_mode<synchronous>, transform_indices = @transform_2, window_bounds = array<i64: 1, 32>}, {pipeline_mode = #tpu.pipeline_mode<synchronous>, transform_indices = @transform_3, window_bounds = array<i64: 32, 32>}, {pipeline_mode = #tpu.pipeline_mode<synchronous>, transform_indices = @transform_4, window_bounds = array<i64: 1, 32>}, {pipeline_mode = #tpu.pipeline_mode<synchronous>, transform_indices = @transform_5, window_bounds = array<i64: 32, 32>}, {pipeline_mode = #tpu.pipeline_mode<synchronous>, transform_indices = @transform_6, window_bounds = array<i64: 1, 32>}, {pipeline_mode = #tpu.pipeline_mode<synchronous>, transform_indices = @transform_7, window_bounds = array<i64: 32, 32>}, {pipeline_mode = #tpu.pipeline_mode<synchronous>, transform_indices = @transform_8, window_bounds = array<i64: 32, 32>}, {pipeline_mode = #tpu.pipeline_mode<synchronous>, transform_indices = @transform_9, window_bounds = array<i64: 1, 32>}, {pipeline_mode = #tpu.pipeline_mode<synchronous>, transform_indices = @transform_10, window_bounds = array<i64: 32, 32>}, {pipeline_mode = #tpu.pipeline_mode<synchronous>, transform_indices = @transform_11, window_bounds = array<i64: 1, 32>}, {pipeline_mode = #tpu.pipeline_mode<synchronous>, transform_indices = @transform_12, window_bounds = array<i64: 32, 32>}, {pipeline_mode = #tpu.pipeline_mode<synchronous>, transform_indices = @transform_13, window_bounds = array<i64: 1, 32>}, {transform_indices = @transform_14, window_bounds = array<i64: 8, 32>}]} {
    %c0 = arith.constant 0 : index
    %c0_0 = arith.constant 0 : index
    %0 = vector.load %arg1[%c0, %c0_0] : memref<64x4xf32, #tpu.memory_space<vmem>>, vector<64x4xf32>
    %c0_1 = arith.constant 0 : index
    %c0_2 = arith.constant 0 : index
    %1 = vector.load %arg2[%c0_1, %c0_2] : memref<4x32xbf16, #tpu.memory_space<vmem>>, vector<4x32xbf16>
    %c0_3 = arith.constant 0 : index
    %c0_4 = arith.constant 0 : index
    %2 = vector.load %arg3[%c0_3, %c0_4] : memref<1x32xf32, #tpu.memory_space<vmem>>, vector<1x32xf32>
    %3 = arith.truncf %0 : vector<64x4xf32> to vector<64x4xbf16>
    %cst = arith.constant dense<0.000000e+00> : vector<64x32xf32>
    %4 = tpu.matmul %3, %1, %cst {dimension_numbers = #tpu.dot_dimension_numbers<[1], [0], [0], [1], [0, 0, 1, 1], [], []>} : vector<64x4xbf16>, vector<4x32xbf16>, vector<64x32xf32> -> vector<64x32xf32>
    %5 = vector.broadcast %2 : vector<1x32xf32> to vector<64x32xf32>
    %6 = arith.addf %4, %5 : vector<64x32xf32>
    %cst_5 = arith.constant 0.000000e+00 : f32
    %7 = vector.broadcast %cst_5 : f32 to vector<64x32xf32>
    %8 = arith.maximumf %6, %7 : vector<64x32xf32>
    %c0_6 = arith.constant 0 : index
    %c0_7 = arith.constant 0 : index
    %9 = vector.load %arg4[%c0_6, %c0_7] : memref<32x32xbf16, #tpu.memory_space<vmem>>, vector<32x32xbf16>
    %c0_8 = arith.constant 0 : index
    %c0_9 = arith.constant 0 : index
    %10 = vector.load %arg5[%c0_8, %c0_9] : memref<1x32xf32, #tpu.memory_space<vmem>>, vector<1x32xf32>
    %11 = arith.truncf %8 : vector<64x32xf32> to vector<64x32xbf16>
    %cst_10 = arith.constant dense<0.000000e+00> : vector<64x32xf32>
    %12 = tpu.matmul %11, %9, %cst_10 {dimension_numbers = #tpu.dot_dimension_numbers<[1], [0], [0], [1], [0, 0, 1, 1], [], []>} : vector<64x32xbf16>, vector<32x32xbf16>, vector<64x32xf32> -> vector<64x32xf32>
    %13 = vector.broadcast %10 : vector<1x32xf32> to vector<64x32xf32>
    %14 = arith.addf %12, %13 : vector<64x32xf32>
    %cst_11 = arith.constant 0.000000e+00 : f32
    %15 = vector.broadcast %cst_11 : f32 to vector<64x32xf32>
    %16 = arith.maximumf %14, %15 : vector<64x32xf32>
    %c0_12 = arith.constant 0 : index
    %c0_13 = arith.constant 0 : index
    %17 = vector.load %arg6[%c0_12, %c0_13] : memref<32x32xbf16, #tpu.memory_space<vmem>>, vector<32x32xbf16>
    %c0_14 = arith.constant 0 : index
    %c0_15 = arith.constant 0 : index
    %18 = vector.load %arg7[%c0_14, %c0_15] : memref<1x32xf32, #tpu.memory_space<vmem>>, vector<1x32xf32>
    %19 = arith.truncf %16 : vector<64x32xf32> to vector<64x32xbf16>
    %cst_16 = arith.constant dense<0.000000e+00> : vector<64x32xf32>
    %20 = tpu.matmul %19, %17, %cst_16 {dimension_numbers = #tpu.dot_dimension_numbers<[1], [0], [0], [1], [0, 0, 1, 1], [], []>} : vector<64x32xbf16>, vector<32x32xbf16>, vector<64x32xf32> -> vector<64x32xf32>
    %21 = vector.broadcast %18 : vector<1x32xf32> to vector<64x32xf32>
    %22 = arith.addf %20, %21 : vector<64x32xf32>
    %23 = vector.shape_cast %22 : vector<64x32xf32> to vector<8x8x32xf32>
    %cst_17 = arith.constant dense<0xFF800000> : vector<8x32xf32>
    %24 = vector.multi_reduction <maximumf>, %23, %cst_17 [1] : vector<8x8x32xf32> to vector<8x32xf32>
    %c0_18 = arith.constant 0 : index
    %c0_19 = arith.constant 0 : index
    %25 = vector.load %arg8[%c0_18, %c0_19] : memref<32x32xbf16, #tpu.memory_space<vmem>>, vector<32x32xbf16>
    %c0_20 = arith.constant 0 : index
    %c0_21 = arith.constant 0 : index
    %26 = vector.load %arg9[%c0_20, %c0_21] : memref<32x32xbf16, #tpu.memory_space<vmem>>, vector<32x32xbf16>
    %c0_22 = arith.constant 0 : index
    %c0_23 = arith.constant 0 : index
    %27 = vector.load %arg10[%c0_22, %c0_23] : memref<1x32xf32, #tpu.memory_space<vmem>>, vector<1x32xf32>
    %28 = arith.truncf %22 : vector<64x32xf32> to vector<64x32xbf16>
    %cst_24 = arith.constant dense<0.000000e+00> : vector<64x32xf32>
    %29 = tpu.matmul %28, %25, %cst_24 {dimension_numbers = #tpu.dot_dimension_numbers<[1], [0], [0], [1], [0, 0, 1, 1], [], []>} : vector<64x32xbf16>, vector<32x32xbf16>, vector<64x32xf32> -> vector<64x32xf32>
    %30 = arith.truncf %24 : vector<8x32xf32> to vector<8x32xbf16>
    %cst_25 = arith.constant dense<0.000000e+00> : vector<8x32xf32>
    %31 = tpu.matmul %30, %26, %cst_25 {dimension_numbers = #tpu.dot_dimension_numbers<[1], [0], [0], [1], [0, 0, 1, 1], [], []>} : vector<8x32xbf16>, vector<32x32xbf16>, vector<8x32xf32> -> vector<8x32xf32>
    %32 = vector.shape_cast %29 : vector<64x32xf32> to vector<8x8x32xf32>
    %33 = vector.shape_cast %31 : vector<8x32xf32> to vector<8x1x32xf32>
    %34 = vector.broadcast %33 : vector<8x1x32xf32> to vector<8x8x32xf32>
    %35 = arith.addf %32, %34 : vector<8x8x32xf32>
    %36 = vector.shape_cast %27 : vector<1x32xf32> to vector<1x1x32xf32>
    %37 = vector.broadcast %36 : vector<1x1x32xf32> to vector<8x8x32xf32>
    %38 = arith.addf %35, %37 : vector<8x8x32xf32>
    %cst_26 = arith.constant 0.000000e+00 : f32
    %39 = vector.broadcast %cst_26 : f32 to vector<8x8x32xf32>
    %40 = arith.maximumf %38, %39 : vector<8x8x32xf32>
    %41 = vector.shape_cast %40 : vector<8x8x32xf32> to vector<64x32xf32>
    %c0_27 = arith.constant 0 : index
    %c0_28 = arith.constant 0 : index
    %42 = vector.load %arg11[%c0_27, %c0_28] : memref<32x32xbf16, #tpu.memory_space<vmem>>, vector<32x32xbf16>
    %c0_29 = arith.constant 0 : index
    %c0_30 = arith.constant 0 : index
    %43 = vector.load %arg12[%c0_29, %c0_30] : memref<1x32xf32, #tpu.memory_space<vmem>>, vector<1x32xf32>
    %44 = arith.truncf %41 : vector<64x32xf32> to vector<64x32xbf16>
    %cst_31 = arith.constant dense<0.000000e+00> : vector<64x32xf32>
    %45 = tpu.matmul %44, %42, %cst_31 {dimension_numbers = #tpu.dot_dimension_numbers<[1], [0], [0], [1], [0, 0, 1, 1], [], []>} : vector<64x32xbf16>, vector<32x32xbf16>, vector<64x32xf32> -> vector<64x32xf32>
    %46 = vector.broadcast %43 : vector<1x32xf32> to vector<64x32xf32>
    %47 = arith.addf %45, %46 : vector<64x32xf32>
    %cst_32 = arith.constant 0.000000e+00 : f32
    %48 = vector.broadcast %cst_32 : f32 to vector<64x32xf32>
    %49 = arith.maximumf %47, %48 : vector<64x32xf32>
    %c0_33 = arith.constant 0 : index
    %c0_34 = arith.constant 0 : index
    %50 = vector.load %arg13[%c0_33, %c0_34] : memref<32x32xbf16, #tpu.memory_space<vmem>>, vector<32x32xbf16>
    %c0_35 = arith.constant 0 : index
    %c0_36 = arith.constant 0 : index
    %51 = vector.load %arg14[%c0_35, %c0_36] : memref<1x32xf32, #tpu.memory_space<vmem>>, vector<1x32xf32>
    %52 = arith.truncf %49 : vector<64x32xf32> to vector<64x32xbf16>
    %cst_37 = arith.constant dense<0.000000e+00> : vector<64x32xf32>
    %53 = tpu.matmul %52, %50, %cst_37 {dimension_numbers = #tpu.dot_dimension_numbers<[1], [0], [0], [1], [0, 0, 1, 1], [], []>} : vector<64x32xbf16>, vector<32x32xbf16>, vector<64x32xf32> -> vector<64x32xf32>
    %54 = vector.broadcast %51 : vector<1x32xf32> to vector<64x32xf32>
    %55 = arith.addf %53, %54 : vector<64x32xf32>
    %56 = vector.shape_cast %55 : vector<64x32xf32> to vector<8x8x32xf32>
    %cst_38 = arith.constant dense<0xFF800000> : vector<8x32xf32>
    %57 = vector.multi_reduction <maximumf>, %56, %cst_38 [1] : vector<8x8x32xf32> to vector<8x32xf32>
    %c0_39 = arith.constant 0 : index
    %c0_40 = arith.constant 0 : index
    %58 = vector.load %arg15[%c0_39, %c0_40] : memref<8x32xf32, #tpu.memory_space<vmem>>, vector<8x32xf32>
    tpu.vector_store %arg15[%c0_39, %c0_40], %57 {strides = array<i32>} : memref<8x32xf32, #tpu.memory_space<vmem>>, vector<8x32xf32>,
    return
  }
  func.func @transform_0(%arg0: i32) -> (i32, i32) {
    %c0_i32 = arith.constant 0 : i32
    %c0_i32_0 = arith.constant 0 : i32
    return %arg0, %c0_i32 : i32, i32
  }
  func.func @transform_1(%arg0: i32) -> (i32, i32) {
    %c0_i32 = arith.constant 0 : i32
    %c0_i32_0 = arith.constant 0 : i32
    %c0_i32_1 = arith.constant 0 : i32
    return %c0_i32, %c0_i32_0 : i32, i32
  }
  func.func @transform_2(%arg0: i32) -> (i32, i32) {
    %c0_i32 = arith.constant 0 : i32
    %c0_i32_0 = arith.constant 0 : i32
    %c0_i32_1 = arith.constant 0 : i32
    return %c0_i32, %c0_i32_0 : i32, i32
  }
  func.func @transform_3(%arg0: i32) -> (i32, i32) {
    %c0_i32 = arith.constant 0 : i32
    %c0_i32_0 = arith.constant 0 : i32
    %c0_i32_1 = arith.constant 0 : i32
    return %c0_i32, %c0_i32_0 : i32, i32
  }
  func.func @transform_4(%arg0: i32) -> (i32, i32) {
    %c0_i32 = arith.constant 0 : i32
    %c0_i32_0 = arith.constant 0 : i32
    %c0_i32_1 = arith.constant 0 : i32
    return %c0_i32, %c0_i32_0 : i32, i32
  }
  func.func @transform_5(%arg0: i32) -> (i32, i32) {
    %c0_i32 = arith.constant 0 : i32
    %c0_i32_0 = arith.constant 0 : i32
    %c0_i32_1 = arith.constant 0 : i32
    return %c0_i32, %c0_i32_0 : i32, i32
  }
  func.func @transform_6(%arg0: i32) -> (i32, i32) {
    %c0_i32 = arith.constant 0 : i32
    %c0_i32_0 = arith.constant 0 : i32
    %c0_i32_1 = arith.constant 0 : i32
    return %c0_i32, %c0_i32_0 : i32, i32
  }
  func.func @transform_7(%arg0: i32) -> (i32, i32) {
    %c0_i32 = arith.constant 0 : i32
    %c0_i32_0 = arith.constant 0 : i32
    %c0_i32_1 = arith.constant 0 : i32
    return %c0_i32, %c0_i32_0 : i32, i32
  }
  func.func @transform_8(%arg0: i32) -> (i32, i32) {
    %c0_i32 = arith.constant 0 : i32
    %c0_i32_0 = arith.constant 0 : i32
    %c0_i32_1 = arith.constant 0 : i32
    return %c0_i32, %c0_i32_0 : i32, i32
  }
  func.func @transform_9(%arg0: i32) -> (i32, i32) {
    %c0_i32 = arith.constant 0 : i32
    %c0_i32_0 = arith.constant 0 : i32
    %c0_i32_1 = arith.constant 0 : i32
    return %c0_i32, %c0_i32_0 : i32, i32
  }
  func.func @transform_10(%arg0: i32) -> (i32, i32) {
    %c0_i32 = arith.constant 0 : i32
    %c0_i32_0 = arith.constant 0 : i32
    %c0_i32_1 = arith.constant 0 : i32
    return %c0_i32, %c0_i32_0 : i32, i32
  }
  func.func @transform_11(%arg0: i32) -> (i32, i32) {
    %c0_i32 = arith.constant 0 : i32
    %c0_i32_0 = arith.constant 0 : i32
    %c0_i32_1 = arith.constant 0 : i32
    return %c0_i32, %c0_i32_0 : i32, i32
  }
  func.func @transform_12(%arg0: i32) -> (i32, i32) {
    %c0_i32 = arith.constant 0 : i32
    %c0_i32_0 = arith.constant 0 : i32
    %c0_i32_1 = arith.constant 0 : i32
    return %c0_i32, %c0_i32_0 : i32, i32
  }
  func.func @transform_13(%arg0: i32) -> (i32, i32) {
    %c0_i32 = arith.constant 0 : i32
    %c0_i32_0 = arith.constant 0 : i32
    %c0_i32_1 = arith.constant 0 : i32
    return %c0_i32, %c0_i32_0 : i32, i32
  }
  func.func @transform_14(%arg0: i32) -> (i32, i32) {
    %c0_i32 = arith.constant 0 : i32
    %c0_i32_0 = arith.constant 0 : i32
    return %arg0, %c0_i32 : i32, i32
  }
}

</mosaic_0001>

<llo_original>
// kernel: tpu_custom_call.1
$region0: #{tpu_custom_call.1}
  #allocation0 [shape = 'u32[]', space=smem, size = 0x4, offset = 0x4, fixed_abs, tag = 'smem constant byte address 0x4 - core index']
  #allocation1 [shape = 'u32[144,128]{1,0:T(1,128)}', space=vmem, size = 0x12000, scoped, tag = 'internal scratch']
  %s0 = inlined_call_operand.vmem [shape: f32[64,4], index: 0, kind: input, shape index: {}]
  %s1 = inlined_call_operand.vmem [shape: bf16[4,32], index: 1, kind: input, shape index: {}]
  %s2 = inlined_call_operand.hbm [shape: f32[1,32], index: 2, kind: input, shape index: {}]
  %s3 = inlined_call_operand.vmem [shape: bf16[32,32], index: 3, kind: input, shape index: {}]
  %s4 = inlined_call_operand.hbm [shape: f32[1,32], index: 4, kind: input, shape index: {}]
  %s5 = inlined_call_operand.vmem [shape: bf16[32,32], index: 5, kind: input, shape index: {}]
  %s6 = inlined_call_operand.hbm [shape: f32[1,32], index: 6, kind: input, shape index: {}]
  %s7 = inlined_call_operand.vmem [shape: bf16[32,32], index: 7, kind: input, shape index: {}]
  %s8 = inlined_call_operand.vmem [shape: bf16[32,32], index: 8, kind: input, shape index: {}]
  %s9 = inlined_call_operand.vmem [shape: f32[1,32], index: 9, kind: input, shape index: {}]
  %s10 = inlined_call_operand.vmem [shape: bf16[32,32], index: 10, kind: input, shape index: {}]
  %s11 = inlined_call_operand.vmem [shape: f32[1,32], index: 11, kind: input, shape index: {}]
  %s12 = inlined_call_operand.vmem [shape: bf16[32,32], index: 12, kind: input, shape index: {}]
  %s13 = inlined_call_operand.vmem [shape: f32[1,32], index: 13, kind: input, shape index: {}]
  %s14 = inlined_call_operand.hbm [shape: f32[8,32], index: 14, kind: output, shape index: {}]
  %s15 = sld [smem:[#allocation0]]
  $region78: #{tpu_custom_call.1} parent=0
    _
  %s17 = ssub.s32 1, %s15
  %s18 = scalar_select 0, %s17, %s15
  $region1: #{tpu_custom_call.1} parent=0
    #allocation2 [shape = 'u8[512]{0}', space=vmem, size = 0x400, scoped, tag = 'input window, operand 2, single buffered']
    #allocation3 [shape = 's32[1]{0}', space=sflag, size = 0x4, scoped, tag = 'scoped memory for tpu_custom_call.1']
    #allocation4 [shape = 's32[1]{0}', space=sflag, size = 0x4, scoped, tag = 'scoped memory for tpu_custom_call.1']
    #allocation5 [shape = 'u8[512]{0}', space=vmem, size = 0x400, scoped, tag = 'input window, operand 4, single buffered']
    #allocation6 [shape = 's32[1]{0}', space=sflag, size = 0x4, scoped, tag = 'scoped memory for tpu_custom_call.1']
    #allocation7 [shape = 'u8[512]{0}', space=vmem, size = 0x400, scoped, tag = 'input window, operand 6, single buffered']
    #allocation8 [shape = 'u8[4096]{0}', space=vmem, size = 0x1000, scoped, tag = 'output window, operand 0, single buffered']
    %19 = vsyncpa [#allocation3], 0
    %20 = vsyncpa [#allocation6], 0
    %21 = vsyncpa [#allocation4], 0
    // Predicated region
    $region2: #{tpu_custom_call.1} parent=1 // pred_check
      _
    $region3: #{tpu_custom_call.1} parent=1 // pred_check_branch
      %23 = sbr.rel (0) target = $region5
    $region4: #{tpu_custom_call.1} parent=1 // pred_region
      _
    $region5: #{tpu_custom_call.1} parent=1 // pred_fallthru
      _
    // Predicated region
    $region6: #{tpu_custom_call.1} parent=1 // pred_check
      _
    $region7: #{tpu_custom_call.1} parent=1 // pred_check_branch
      %25 = sbr.rel (0) target = $region9
    $region8: #{tpu_custom_call.1} parent=1 // pred_region
      _
    $region9: #{tpu_custom_call.1} parent=1 // pred_fallthru
      _
    // Predicated region
    $region10: #{tpu_custom_call.1} parent=1 // pred_check
      _
    $region11: #{tpu_custom_call.1} parent=1 // pred_check_branch
      %27 = sbr.rel (0) target = $region13
    $region12: #{tpu_custom_call.1} parent=1 // pred_region
      %s29 = ssub.s32 16, 16
      %30 = vsyncadd [#allocation3], %s29
      %s32 = sshll.u32 [#allocation2], 4
      %s33 = int_to_ptr.vmem [resolvable:$true] %s32
      %35 = dma.hbm_to_vmem [thread:$0]  %s2, 16, %s33, [#allocation3]
    $region13: #{tpu_custom_call.1} parent=1 // pred_fallthru
      _
    // Predicated region
    $region14: #{tpu_custom_call.1} parent=1 // pred_check
      _
    $region15: #{tpu_custom_call.1} parent=1 // pred_check_branch
      %37 = sbr.rel (0) target = $region17
    $region16: #{tpu_custom_call.1} parent=1 // pred_region
      _
    $region17: #{tpu_custom_call.1} parent=1 // pred_fallthru
      _
    // Predicated region
    $region18: #{tpu_custom_call.1} parent=1 // pred_check
      _
    $region19: #{tpu_custom_call.1} parent=1 // pred_check_branch
      %39 = sbr.rel (0) target = $region21
    $region20: #{tpu_custom_call.1} parent=1 // pred_region
      %s41 = ssub.s32 16, 16
      %42 = vsyncadd [#allocation6], %s41
      %s44 = sshll.u32 [#allocation5], 4
      %s45 = int_to_ptr.vmem [resolvable:$true] %s44
      %47 = dma.hbm_to_vmem [thread:$0]  %s4, 16, %s45, [#allocation6]
    $region21: #{tpu_custom_call.1} parent=1 // pred_fallthru
      _
    // Predicated region
    $region22: #{tpu_custom_call.1} parent=1 // pred_check
      _
    $region23: #{tpu_custom_call.1} parent=1 // pred_check_branch
      %49 = sbr.rel (0) target = $region25
    $region24: #{tpu_custom_call.1} parent=1 // pred_region
      _
    $region25: #{tpu_custom_call.1} parent=1 // pred_fallthru
      _
    // Predicated region
    $region26: #{tpu_custom_call.1} parent=1 // pred_check
      _
    $region27: #{tpu_custom_call.1} parent=1 // pred_check_branch
      %51 = sbr.rel (0) target = $region29
    $region28: #{tpu_custom_call.1} parent=1 // pred_region
      %s53 = ssub.s32 16, 16
      %54 = vsyncadd [#allocation6], %s53
      %s56 = sshll.u32 [#allocation7], 4
      %s57 = int_to_ptr.vmem [resolvable:$true] %s56
      %59 = dma.hbm_to_vmem [thread:$0]  %s6, 16, %s57, [#allocation6]
    $region29: #{tpu_custom_call.1} parent=1 // pred_fallthru
      _
    // Predicated region
    $region30: #{tpu_custom_call.1} parent=1 // pred_check
      _
    $region31: #{tpu_custom_call.1} parent=1 // pred_check_branch
      %61 = sbr.rel (0) target = $region33
    $region32: #{tpu_custom_call.1} parent=1 // pred_region
      _
    $region33: #{tpu_custom_call.1} parent=1 // pred_fallthru
      _
    // Predicated region
    $region34: #{tpu_custom_call.1} parent=1 // pred_check
      _
    $region35: #{tpu_custom_call.1} parent=1 // pred_check_branch
      %63 = sbr.rel (0) target = $region37
    $region36: #{tpu_custom_call.1} parent=1 // pred_region
      _
    $region37: #{tpu_custom_call.1} parent=1 // pred_fallthru
      _
    // Predicated region
    $region38: #{tpu_custom_call.1} parent=1 // pred_check
      _
    $region39: #{tpu_custom_call.1} parent=1 // pred_check_branch
      %65 = sbr.rel (0) target = $region41
    $region40: #{tpu_custom_call.1} parent=1 // pred_region
      _
    $region41: #{tpu_custom_call.1} parent=1 // pred_fallthru
      _
    // Predicated region
    $region42: #{tpu_custom_call.1} parent=1 // pred_check
      _
    $region43: #{tpu_custom_call.1} parent=1 // pred_check_branch
      %67 = sbr.rel (0) target = $region45
    $region44: #{tpu_custom_call.1} parent=1 // pred_region
      _
    $region45: #{tpu_custom_call.1} parent=1 // pred_fallthru
      _
    // Predicated region
    $region46: #{tpu_custom_call.1} parent=1 // pred_check
      _
    $region47: #{tpu_custom_call.1} parent=1 // pred_check_branch
      %69 = sbr.rel (0) target = $region49
    $region48: #{tpu_custom_call.1} parent=1 // pred_region
      _
    $region49: #{tpu_custom_call.1} parent=1 // pred_fallthru
      _
    // Predicated region
    $region50: #{tpu_custom_call.1} parent=1 // pred_check
      _
    $region51: #{tpu_custom_call.1} parent=1 // pred_check_branch
      %71 = sbr.rel (0) target = $region53
    $region52: #{tpu_custom_call.1} parent=1 // pred_region
      _
    $region53: #{tpu_custom_call.1} parent=1 // pred_fallthru
      _
    // Predicated region
    $region54: #{tpu_custom_call.1} parent=1 // pred_check
      _
    $region55: #{tpu_custom_call.1} parent=1 // pred_check_branch
      %73 = sbr.rel (0) target = $region57
    $region56: #{tpu_custom_call.1} parent=1 // pred_region
      _
    $region57: #{tpu_custom_call.1} parent=1 // pred_fallthru
      _
    // Predicated region
    $region58: #{tpu_custom_call.1} parent=1 // pred_check
      _
    $region59: #{tpu_custom_call.1} parent=1 // pred_check_branch
      %75 = sbr.rel (0) target = $region61
    $region60: #{tpu_custom_call.1} parent=1 // pred_region
      %76 = dma.done [#allocation3], 16
    $region61: #{tpu_custom_call.1} parent=1 // pred_fallthru
      _
    // Predicated region
    $region62: #{tpu_custom_call.1} parent=1 // pred_check
      _
    $region63: #{tpu_custom_call.1} parent=1 // pred_check_branch
      %78 = sbr.rel (0) target = $region65
    $region64: #{tpu_custom_call.1} parent=1 // pred_region
      %79 = dma.done [#allocation6], 16
    $region65: #{tpu_custom_call.1} parent=1 // pred_fallthru
      _
    // Predicated region
    $region66: #{tpu_custom_call.1} parent=1 // pred_check
      _
    $region67: #{tpu_custom_call.1} parent=1 // pred_check_branch
      %81 = sbr.rel (0) target = $region69
    $region68: #{tpu_custom_call.1} parent=1 // pred_region
      %82 = dma.done [#allocation6], 16
    $region69: #{tpu_custom_call.1} parent=1 // pred_fallthru
      _
    %v84 = vld [vmem:[%s0] sm:$0xff]
    %v85 = vld [vmem:[%s0 + $0x8] sm:$0xff]
    %v86 = vld [vmem:[%s0 + $0x10] sm:$0xff]
    %v87 = vld [vmem:[%s0 + $0x18] sm:$0xff]
    %v88 = vld [vmem:[%s0 + $0x20] sm:$0xff]
    %v89 = vld [vmem:[%s0 + $0x28] sm:$0xff]
    %v90 = vld [vmem:[%s0 + $0x30] sm:$0xff]
    %v91 = vld [vmem:[%s0 + $0x38] sm:$0xff]
    %v92 = vld [vmem:[%s1] sm:$0x3]
    %v93 = vld [vmem:[#allocation2] sm:$0x1]
    %v94 = vpack.c.bf16 %v85, %v84
    %v95 = vpack.c.bf16 %v87, %v86
    %v96 = vpack.c.bf16 %v89, %v88
    %v97 = vpack.c.bf16 %v91, %v90
    %v99 = vlaneseq
    %v100 = vshrl.u32 %v99, 7
    %v101 = vsub.s32 0, %v100
    %v102 = vrot.slane %v93, %v101
    %vm104 = vcmask 31744
    %v106 = vsel %vm104, %v94, 0
    %v109 = vsel %vm104, %v95, 0
    %v112 = vsel %vm104, %v96, 0
    %v115 = vsel %vm104, %v97, 0
    %vm117 = vcmask 1041408
    %v119 = vsel %vm117, %v92, 0
    %121 = vmatprep.subr.bf16.mxu0 0
    %122 = vmatpush1.bf16.msra.mxu0 %v119
    %123 = vmatprep.subr.bf16.mxu0 0
    %124 = vmatpush1.bf16.msra.mxu0 0
    %125 = vmatprep.subr.bf16.mxu0 0
    %126 = vmatpush1.bf16.msra.mxu0 0
    %127 = vmatprep.subr.bf16.mxu0 0
    %128 = vmatpush1.bf16.msra.mxu0 0
    %129 = vmatprep.subr.bf16.mxu0 0
    %130 = vmatpush1.bf16.msra.mxu0 0
    %131 = vmatprep.subr.bf16.mxu0 0
    %132 = vmatpush1.bf16.msra.mxu0 0
    %133 = vmatprep.subr.bf16.mxu0 0
    %134 = vmatpush1.bf16.msra.mxu0 0
    %135 = vmatprep.subr.bf16.mxu0 0
    %136 = vmatpush1.bf16.msra.mxu0 0
    %137 = vmatprep.subr.bf16.mxu0 0
    %138 = vmatpush1.bf16.msra.mxu0 0
    %139 = vmatprep.subr.bf16.mxu0 0
    %140 = vmatpush1.bf16.msra.mxu0 0
    %141 = vmatprep.subr.bf16.mxu0 0
    %142 = vmatpush1.bf16.msra.mxu0 0
    %143 = vmatprep.subr.bf16.mxu0 0
    %144 = vmatpush1.bf16.msra.mxu0 0
    %145 = vmatprep.subr.bf16.mxu0 0
    %146 = vmatpush1.bf16.msra.mxu0 0
    %147 = vmatprep.subr.bf16.mxu0 0
    %148 = vmatpush1.bf16.msra.mxu0 0
    %149 = vmatprep.subr.bf16.mxu0 0
    %150 = vmatpush1.bf16.msra.mxu0 0
    %151 = vmatprep.subr.bf16.mxu0 0
    %152 = vmatpush1.bf16.msra.mxu0 0
    %153 = vmatprep.mubr.bf16.mxu0 0
    %154 = vmatmul.mubr.bf16.gmra.mrb[0].mxu0 %v106
    %v155 = vpop.f32.mrb[0].mxu0
    %v156 = vadd.f32 %v102, %v155
    %v157 = vpop.f32.mrb[0].mxu0
    %v158 = vpop.f32.mrb[0].mxu0
    %v159 = vadd.f32 %v102, %v158
    %v160 = vpop.f32.mrb[0].mxu0
    %161 = vmatprep.mubr.bf16.mxu0 0
    %162 = vmatmul.mubr.bf16.gmra.mrb[0].mxu0 %v109
    %v163 = vpop.f32.mrb[0].mxu0
    %v164 = vadd.f32 %v102, %v163
    %v165 = vpop.f32.mrb[0].mxu0
    %v166 = vpop.f32.mrb[0].mxu0
    %v167 = vadd.f32 %v102, %v166
    %v168 = vpop.f32.mrb[0].mxu0
    %169 = vmatprep.mubr.bf16.mxu0 0
    %170 = vmatmul.mubr.bf16.gmra.mrb[0].mxu0 %v112
    %v171 = vpop.f32.mrb[0].mxu0
    %v172 = vadd.f32 %v102, %v171
    %v173 = vpop.f32.mrb[0].mxu0
    %v174 = vpop.f32.mrb[0].mxu0
    %v175 = vadd.f32 %v102, %v174
    %v176 = vpop.f32.mrb[0].mxu0
    %177 = vmatprep.mubr.bf16.mxu0 0
    %178 = vmatmul.mubr.bf16.gmra.mrb[0].mxu0 %v115
    %v179 = vpop.f32.mrb[0].mxu0
    %v180 = vadd.f32 %v102, %v179
    %v181 = vpop.f32.mrb[0].mxu0
    %v182 = vpop.f32.mrb[0].mxu0
    %v183 = vadd.f32 %v102, %v182
    %v184 = vpop.f32.mrb[0].mxu0
    %185 = vdwg.mxu0
    %v186 = vmax.f32 %v156, 0.0
    %v187 = vmax.f32 %v159, 0.0
    %v188 = vmax.f32 %v164, 0.0
    %v189 = vmax.f32 %v167, 0.0
    %v190 = vmax.f32 %v172, 0.0
    %v191 = vmax.f32 %v175, 0.0
    %v192 = vmax.f32 %v180, 0.0
    %v193 = vmax.f32 %v183, 0.0
    %v194 = vld [vmem:[%s3] sm:$0xf]
    %v195 = vld [vmem:[%s3 + $0x4] sm:$0xf]
    %v196 = vld [vmem:[%s3 + $0x8] sm:$0xf]
    %v197 = vld [vmem:[%s3 + $0xc] sm:$0xf]
    %v198 = vld [vmem:[#allocation5] sm:$0x1]
    %v199 = vpack.c.bf16 %v187, %v186
    %v200 = vpack.c.bf16 %v189, %v188
    %v201 = vpack.c.bf16 %v191, %v190
    %v202 = vpack.c.bf16 %v193, %v192
    %v204 = vlaneseq
    %v205 = vshrl.u32 %v204, 7
    %v206 = vsub.s32 0, %v205
    %v207 = vrot.slane %v198, %v206
    %v213 = vunpack.c.l.b16 %v194
    %v214 = vunpack.c.l.b16 %v195
    %v215 = vunpack.c.l.b16 %v196
    %v216 = vunpack.c.l.b16 %v197
    %v217 = vpack.c.b16 %v214, %v213
    %v218 = vpack.c.b16 %v216, %v215
    %vm221 = vcmask 261120
    %v223 = vsel %vm221, %v199, 0
    %v226 = vsel %vm221, %v200, 0
    %v229 = vsel %vm221, %v201, 0
    %v232 = vsel %vm221, %v202, 0
    %234 = vmatprep.subr.bf16.mxu0 0
    %235 = vmatpush1.bf16.msra.mxu0 %v217
    %236 = vmatprep.subr.bf16.mxu0 0
    %237 = vmatpush1.bf16.msra.mxu0 %v218
    %238 = vmatprep.subr.bf16.mxu0 0
    %239 = vmatpush1.bf16.msra.mxu0 0
    %240 = vmatprep.subr.bf16.mxu0 0
    %241 = vmatpush1.bf16.msra.mxu0 0
    %242 = vmatprep.subr.bf16.mxu0 0
    %243 = vmatpush1.bf16.msra.mxu0 0
    %244 = vmatprep.subr.bf16.mxu0 0
    %245 = vmatpush1.bf16.msra.mxu0 0
    %246 = vmatprep.subr.bf16.mxu0 0
    %247 = vmatpush1.bf16.msra.mxu0 0
    %248 = vmatprep.subr.bf16.mxu0 0
    %249 = vmatpush1.bf16.msra.mxu0 0
    %250 = vmatprep.subr.bf16.mxu0 0
    %251 = vmatpush1.bf16.msra.mxu0 0
    %252 = vmatprep.subr.bf16.mxu0 0
    %253 = vmatpush1.bf16.msra.mxu0 0
    %254 = vmatprep.subr.bf16.mxu0 0
    %255 = vmatpush1.bf16.msra.mxu0 0
    %256 = vmatprep.subr.bf16.mxu0 0
    %257 = vmatpush1.bf16.msra.mxu0 0
    %258 = vmatprep.subr.bf16.mxu0 0
    %259 = vmatpush1.bf16.msra.mxu0 0
    %260 = vmatprep.subr.bf16.mxu0 0
    %261 = vmatpush1.bf16.msra.mxu0 0
    %262 = vmatprep.subr.bf16.mxu0 0
    %263 = vmatpush1.bf16.msra.mxu0 0
    %264 = vmatprep.subr.bf16.mxu0 0
    %265 = vmatpush1.bf16.msra.mxu0 0
    %266 = vmatprep.mubr.bf16.mxu0 0
    %267 = vmatmul.mubr.bf16.gmra.mrb[0].mxu0 %v223
    %v268 = vpop.f32.mrb[0].mxu0
    %v269 = vadd.f32 %v207, %v268
    %v270 = vpop.f32.mrb[0].mxu0
    %v271 = vpop.f32.mrb[0].mxu0
    %v272 = vadd.f32 %v207, %v271
    %v273 = vpop.f32.mrb[0].mxu0
    %274 = vmatprep.mubr.bf16.mxu0 0
    %275 = vmatmul.mubr.bf16.gmra.mrb[0].mxu0 %v226
    %v276 = vpop.f32.mrb[0].mxu0
    %v277 = vadd.f32 %v207, %v276
    %v278 = vpop.f32.mrb[0].mxu0
    %v279 = vpop.f32.mrb[0].mxu0
    %v280 = vadd.f32 %v207, %v279
    %v281 = vpop.f32.mrb[0].mxu0
    %282 = vmatprep.mubr.bf16.mxu0 0
    %283 = vmatmul.mubr.bf16.gmra.mrb[0].mxu0 %v229
    %v284 = vpop.f32.mrb[0].mxu0
    %v285 = vadd.f32 %v207, %v284
    %v286 = vpop.f32.mrb[0].mxu0
    %v287 = vpop.f32.mrb[0].mxu0
    %v288 = vadd.f32 %v207, %v287
    %v289 = vpop.f32.mrb[0].mxu0
    %290 = vmatprep.mubr.bf16.mxu0 0
    %291 = vmatmul.mubr.bf16.gmra.mrb[0].mxu0 %v232
    %v292 = vpop.f32.mrb[0].mxu0
    %v293 = vadd.f32 %v207, %v292
    %v294 = vpop.f32.mrb[0].mxu0
    %v295 = vpop.f32.mrb[0].mxu0
    %v296 = vadd.f32 %v207, %v295
    %v297 = vpop.f32.mrb[0].mxu0
    %298 = vdwg.mxu0
    %v299 = vmax.f32 %v269, 0.0
    %v300 = vmax.f32 %v272, 0.0
    %v301 = vmax.f32 %v277, 0.0
    %v302 = vmax.f32 %v280, 0.0
    %v303 = vmax.f32 %v285, 0.0
    %v304 = vmax.f32 %v288, 0.0
    %v305 = vmax.f32 %v293, 0.0
    %v306 = vmax.f32 %v296, 0.0
    %v307 = vld [vmem:[%s5] sm:$0xf]
    %v308 = vld [vmem:[%s5 + $0x4] sm:$0xf]
    %v309 = vld [vmem:[%s5 + $0x8] sm:$0xf]
    %v310 = vld [vmem:[%s5 + $0xc] sm:$0xf]
    %v311 = vld [vmem:[#allocation7] sm:$0x1]
    %v312 = vpack.c.bf16 %v300, %v299
    %v313 = vpack.c.bf16 %v302, %v301
    %v314 = vpack.c.bf16 %v304, %v303
    %v315 = vpack.c.bf16 %v306, %v305
    %v317 = vlaneseq
    %v318 = vshrl.u32 %v317, 7
    %v319 = vsub.s32 0, %v318
    %v320 = vrot.slane %v311, %v319
    %v326 = vunpack.c.l.b16 %v307
    %v327 = vunpack.c.l.b16 %v308
    %v328 = vunpack.c.l.b16 %v309
    %v329 = vunpack.c.l.b16 %v310
    %v330 = vpack.c.b16 %v327, %v326
    %v331 = vpack.c.b16 %v329, %v328
    %v335 = vsel %vm221, %v312, 0
    %v338 = vsel %vm221, %v313, 0
    %v341 = vsel %vm221, %v314, 0
    %v344 = vsel %vm221, %v315, 0
    %346 = vmatprep.subr.bf16.mxu0 0
    %347 = vmatpush1.bf16.msra.mxu0 %v330
    %348 = vmatprep.subr.bf16.mxu0 0
    %349 = vmatpush1.bf16.msra.mxu0 %v331
    %350 = vmatprep.subr.bf16.mxu0 0
    %351 = vmatpush1.bf16.msra.mxu0 0
    %352 = vmatprep.subr.bf16.mxu0 0
    %353 = vmatpush1.bf16.msra.mxu0 0
    %354 = vmatprep.subr.bf16.mxu0 0
    %355 = vmatpush1.bf16.msra.mxu0 0
    %356 = vmatprep.subr.bf16.mxu0 0
    %357 = vmatpush1.bf16.msra.mxu0 0
    %358 = vmatprep.subr.bf16.mxu0 0
    %359 = vmatpush1.bf16.msra.mxu0 0
    %360 = vmatprep.subr.bf16.mxu0 0
    %361 = vmatpush1.bf16.msra.mxu0 0
    %362 = vmatprep.subr.bf16.mxu0 0
    %363 = vmatpush1.bf16.msra.mxu0 0
    %364 = vmatprep.subr.bf16.mxu0 0
    %365 = vmatpush1.bf16.msra.mxu0 0
    %366 = vmatprep.subr.bf16.mxu0 0
    %367 = vmatpush1.bf16.msra.mxu0 0
    %368 = vmatprep.subr.bf16.mxu0 0
    %369 = vmatpush1.bf16.msra.mxu0 0
    %370 = vmatprep.subr.bf16.mxu0 0
    %371 = vmatpush1.bf16.msra.mxu0 0
    %372 = vmatprep.subr.bf16.mxu0 0
    %373 = vmatpush1.bf16.msra.mxu0 0
    %374 = vmatprep.subr.bf16.mxu0 0
    %375 = vmatpush1.bf16.msra.mxu0 0
    %376 = vmatprep.subr.bf16.mxu0 0
    %377 = vmatpush1.bf16.msra.mxu0 0
    %378 = vmatprep.mubr.bf16.mxu0 0
    %379 = vmatmul.mubr.bf16.gmra.mrb[0].mxu0 %v335
    %v380 = vpop.f32.mrb[0].mxu0
    %v381 = vadd.f32 %v320, %v380
    %v382 = vpop.f32.mrb[0].mxu0
    %v383 = vpop.f32.mrb[0].mxu0
    %v384 = vadd.f32 %v320, %v383
    %v385 = vpop.f32.mrb[0].mxu0
    %386 = vmatprep.mubr.bf16.mxu0 0
    %387 = vmatmul.mubr.bf16.gmra.mrb[0].mxu0 %v338
    %v388 = vpop.f32.mrb[0].mxu0
    %v389 = vadd.f32 %v320, %v388
    %v390 = vpop.f32.mrb[0].mxu0
    %v391 = vpop.f32.mrb[0].mxu0
    %v392 = vadd.f32 %v320, %v391
    %v393 = vpop.f32.mrb[0].mxu0
    %394 = vmatprep.mubr.bf16.mxu0 0
    %395 = vmatmul.mubr.bf16.gmra.mrb[0].mxu0 %v341
    %v396 = vpop.f32.mrb[0].mxu0
    %v397 = vadd.f32 %v320, %v396
    %v398 = vpop.f32.mrb[0].mxu0
    %v399 = vpop.f32.mrb[0].mxu0
    %v400 = vadd.f32 %v320, %v399
    %v401 = vpop.f32.mrb[0].mxu0
    %402 = vmatprep.mubr.bf16.mxu0 0
    %403 = vmatmul.mubr.bf16.gmra.mrb[0].mxu0 %v344
    %v404 = vpop.f32.mrb[0].mxu0
    %v405 = vadd.f32 %v320, %v404
    %v406 = vpop.f32.mrb[0].mxu0
    %v407 = vpop.f32.mrb[0].mxu0
    %v408 = vadd.f32 %v320, %v407
    %v409 = vpop.f32.mrb[0].mxu0
    %410 = vdwg.mxu0
    %v411 = vsel %vm221, %v381, -inf
    %v412 = vrot.slane %v411, 4
    %v413 = vmax.f32 %v411, %v412
    %v414 = vrot.slane %v413, 2
    %v415 = vmax.f32 %v413, %v414
    %v416 = vrot.slane %v415, 1
    %v417 = vmax.f32 %v415, %v416
    %v418 = vsel %vm221, %v384, -inf
    %v419 = vrot.slane %v418, 4
    %v420 = vmax.f32 %v418, %v419
    %v421 = vrot.slane %v420, 2
    %v422 = vmax.f32 %v420, %v421
    %v423 = vrot.slane %v422, 1
    %v424 = vmax.f32 %v422, %v423
    %v425 = vsel %vm221, %v389, -inf
    %v426 = vrot.slane %v425, 4
    %v427 = vmax.f32 %v425, %v426
    %v428 = vrot.slane %v427, 2
    %v429 = vmax.f32 %v427, %v428
    %v430 = vrot.slane %v429, 1
    %v431 = vmax.f32 %v429, %v430
    %v432 = vsel %vm221, %v392, -inf
    %v433 = vrot.slane %v432, 4
    %v434 = vmax.f32 %v432, %v433
    %v435 = vrot.slane %v434, 2
    %v436 = vmax.f32 %v434, %v435
    %v437 = vrot.slane %v436, 1
    %v438 = vmax.f32 %v436, %v437
    %v439 = vsel %vm221, %v397, -inf
    %v440 = vrot.slane %v439, 4
    %v441 = vmax.f32 %v439, %v440
    %v442 = vrot.slane %v441, 2
    %v443 = vmax.f32 %v441, %v442
    %v444 = vrot.slane %v443, 1
    %v445 = vmax.f32 %v443, %v444
    %v446 = vsel %vm221, %v400, -inf
    %v447 = vrot.slane %v446, 4
    %v448 = vmax.f32 %v446, %v447
    %v449 = vrot.slane %v448, 2
    %v450 = vmax.f32 %v448, %v449
    %v451 = vrot.slane %v450, 1
    %v452 = vmax.f32 %v450, %v451
    %v453 = vsel %vm221, %v405, -inf
    %v454 = vrot.slane %v453, 4
    %v455 = vmax.f32 %v453, %v454
    %v456 = vrot.slane %v455, 2
    %v457 = vmax.f32 %v455, %v456
    %v458 = vrot.slane %v457, 1
    %v459 = vmax.f32 %v457, %v458
    %v460 = vsel %vm221, %v408, -inf
    %v461 = vrot.slane %v460, 4
    %v462 = vmax.f32 %v460, %v461
    %v463 = vrot.slane %v462, 2
    %v464 = vmax.f32 %v462, %v463
    %v465 = vrot.slane %v464, 1
    %v466 = vmax.f32 %v464, %v465
    %v467 = vld [vmem:[%s7] sm:$0xf]
    %v468 = vld [vmem:[%s7 + $0x4] sm:$0xf]
    %v469 = vld [vmem:[%s7 + $0x8] sm:$0xf]
    %v470 = vld [vmem:[%s7 + $0xc] sm:$0xf]
    %v471 = vld [vmem:[%s8] sm:$0xf]
    %v472 = vld [vmem:[%s8 + $0x4] sm:$0xf]
    %v473 = vld [vmem:[%s8 + $0x8] sm:$0xf]
    %v474 = vld [vmem:[%s8 + $0xc] sm:$0xf]
    %v475 = vld [vmem:[%s9] sm:$0x1]
    %v476 = vpack.c.bf16 %v384, %v381
    %v477 = vpack.c.bf16 %v392, %v389
    %v478 = vpack.c.bf16 %v400, %v397
    %v479 = vpack.c.bf16 %v408, %v405
    %v484 = vunpack.c.l.b16 %v467
    %v485 = vunpack.c.l.b16 %v468
    %v486 = vunpack.c.l.b16 %v469
    %v487 = vunpack.c.l.b16 %v470
    %v488 = vpack.c.b16 %v485, %v484
    %v489 = vpack.c.b16 %v487, %v486
    %v493 = vsel %vm221, %v476, 0
    %v496 = vsel %vm221, %v477, 0
    %v499 = vsel %vm221, %v478, 0
    %v502 = vsel %vm221, %v479, 0
    %504 = vmatprep.subr.bf16.mxu0 0
    %505 = vmatpush1.bf16.msra.mxu0 %v488
    %506 = vmatprep.subr.bf16.mxu0 0
    %507 = vmatpush1.bf16.msra.mxu0 %v489
    %508 = vmatprep.subr.bf16.mxu0 0
    %509 = vmatpush1.bf16.msra.mxu0 0
    %510 = vmatprep.subr.bf16.mxu0 0
    %511 = vmatpush1.bf16.msra.mxu0 0
    %512 = vmatprep.subr.bf16.mxu0 0
    %513 = vmatpush1.bf16.msra.mxu0 0
    %514 = vmatprep.subr.bf16.mxu0 0
    %515 = vmatpush1.bf16.msra.mxu0 0
    %516 = vmatprep.subr.bf16.mxu0 0
    %517 = vmatpush1.bf16.msra.mxu0 0
    %518 = vmatprep.subr.bf16.mxu0 0
    %519 = vmatpush1.bf16.msra.mxu0 0
    %520 = vmatprep.subr.bf16.mxu0 0
    %521 = vmatpush1.bf16.msra.mxu0 0
    %522 = vmatprep.subr.bf16.mxu0 0
    %523 = vmatpush1.bf16.msra.mxu0 0
    %524 = vmatprep.subr.bf16.mxu0 0
    %525 = vmatpush1.bf16.msra.mxu0 0
    %526 = vmatprep.subr.bf16.mxu0 0
    %527 = vmatpush1.bf16.msra.mxu0 0
    %528 = vmatprep.subr.bf16.mxu0 0
    %529 = vmatpush1.bf16.msra.mxu0 0
    %530 = vmatprep.subr.bf16.mxu0 0
    %531 = vmatpush1.bf16.msra.mxu0 0
    %532 = vmatprep.subr.bf16.mxu0 0
    %533 = vmatpush1.bf16.msra.mxu0 0
    %534 = vmatprep.subr.bf16.mxu0 0
    %535 = vmatpush1.bf16.msra.mxu0 0
    %536 = vmatprep.mubr.bf16.mxu0 0
    %537 = vmatmul.mubr.bf16.gmra.mrb[0].mxu0 %v493
    %v538 = vpop.f32.mrb[0].mxu0
    %v539 = vadd.f32 0.0, %v538
    %v540 = vpop.f32.mrb[0].mxu0
    %v541 = vpop.f32.mrb[0].mxu0
    %v542 = vadd.f32 0.0, %v541
    %v543 = vpop.f32.mrb[0].mxu0
    %544 = vmatprep.mubr.bf16.mxu0 0
    %545 = vmatmul.mubr.bf16.gmra.mrb[0].mxu0 %v496
    %v546 = vpop.f32.mrb[0].mxu0
    %v547 = vadd.f32 0.0, %v546
    %v548 = vpop.f32.mrb[0].mxu0
    %v549 = vpop.f32.mrb[0].mxu0
    %v550 = vadd.f32 0.0, %v549
    %v551 = vpop.f32.mrb[0].mxu0
    %552 = vmatprep.mubr.bf16.mxu0 0
    %553 = vmatmul.mubr.bf16.gmra.mrb[0].mxu0 %v499
    %v554 = vpop.f32.mrb[0].mxu0
    %v555 = vadd.f32 0.0, %v554
    %v556 = vpop.f32.mrb[0].mxu0
    %v557 = vpop.f32.mrb[0].mxu0
    %v558 = vadd.f32 0.0, %v557
    %v559 = vpop.f32.mrb[0].mxu0
    %560 = vmatprep.mubr.bf16.mxu0 0
    %561 = vmatmul.mubr.bf16.gmra.mrb[0].mxu0 %v502
    %v562 = vpop.f32.mrb[0].mxu0
    %v563 = vadd.f32 0.0, %v562
    %v564 = vpop.f32.mrb[0].mxu0
    %v565 = vpop.f32.mrb[0].mxu0
    %v566 = vadd.f32 0.0, %v565
    %v567 = vpop.f32.mrb[0].mxu0
    %568 = vdwg.mxu0
    %v569 = vpack.c.bf16 %v417, %v417
    %v570 = vpack.c.bf16 %v424, %v424
    %v571 = vpack.c.bf16 %v431, %v431
    %v572 = vpack.c.bf16 %v438, %v438
    %v573 = vpack.c.bf16 %v445, %v445
    %v574 = vpack.c.bf16 %v452, %v452
    %v575 = vpack.c.bf16 %v459, %v459
    %v576 = vpack.c.bf16 %v466, %v466
    %v585 = vunpack.c.l.b16 %v569
    %v586 = vunpack.c.l.b16 %v570
    %v587 = vunpack.c.l.b16 %v571
    %v588 = vunpack.c.l.b16 %v572
    %v589 = vunpack.c.l.b16 %v573
    %v590 = vunpack.c.l.b16 %v574
    %v591 = vunpack.c.l.b16 %v575
    %v592 = vunpack.c.l.b16 %v576
    %vm593 = vcmask 1041409
    %v594 = vsel %vm593, %v586, %v585
    %vm595 = vcmask 1042434
    %v596 = vsel %vm595, %v587, %v594
    %vm597 = vcmask 1043459
    %v598 = vsel %vm597, %v588, %v596
    %vm599 = vcmask 1044484
    %v600 = vsel %vm599, %v589, %v598
    %vm601 = vcmask 1045509
    %v602 = vsel %vm601, %v590, %v600
    %vm603 = vcmask 1046534
    %v604 = vsel %vm603, %v591, %v602
    %vm605 = vcmask 1047559
    %v606 = vsel %vm605, %v592, %v604
    %v607 = vpack.c.b16 %v606, %v606
    %v612 = vunpack.c.l.b16 %v471
    %v613 = vunpack.c.l.b16 %v472
    %v614 = vunpack.c.l.b16 %v473
    %v615 = vunpack.c.l.b16 %v474
    %v616 = vpack.c.b16 %v613, %v612
    %v617 = vpack.c.b16 %v615, %v614
    %v621 = vsel %vm221, %v607, 0
    %623 = vmatprep.subr.bf16.mxu0 0
    %624 = vmatpush1.bf16.msra.mxu0 %v616
    %625 = vmatprep.subr.bf16.mxu0 0
    %626 = vmatpush1.bf16.msra.mxu0 %v617
    %627 = vmatprep.subr.bf16.mxu0 0
    %628 = vmatpush1.bf16.msra.mxu0 0
    %629 = vmatprep.subr.bf16.mxu0 0
    %630 = vmatpush1.bf16.msra.mxu0 0
    %631 = vmatprep.subr.bf16.mxu0 0
    %632 = vmatpush1.bf16.msra.mxu0 0
    %633 = vmatprep.subr.bf16.mxu0 0
    %634 = vmatpush1.bf16.msra.mxu0 0
    %635 = vmatprep.subr.bf16.mxu0 0
    %636 = vmatpush1.bf16.msra.mxu0 0
    %637 = vmatprep.subr.bf16.mxu0 0
    %638 = vmatpush1.bf16.msra.mxu0 0
    %639 = vmatprep.subr.bf16.mxu0 0
    %640 = vmatpush1.bf16.msra.mxu0 0
    %641 = vmatprep.subr.bf16.mxu0 0
    %642 = vmatpush1.bf16.msra.mxu0 0
    %643 = vmatprep.subr.bf16.mxu0 0
    %644 = vmatpush1.bf16.msra.mxu0 0
    %645 = vmatprep.subr.bf16.mxu0 0
    %646 = vmatpush1.bf16.msra.mxu0 0
    %647 = vmatprep.subr.bf16.mxu0 0
    %648 = vmatpush1.bf16.msra.mxu0 0
    %649 = vmatprep.subr.bf16.mxu0 0
    %650 = vmatpush1.bf16.msra.mxu0 0
    %651 = vmatprep.subr.bf16.mxu0 0
    %652 = vmatpush1.bf16.msra.mxu0 0
    %653 = vmatprep.subr.bf16.mxu0 0
    %654 = vmatpush1.bf16.msra.mxu0 0
    %655 = vmatprep.mubr.bf16.mxu0 0
    %656 = vmatmul.mubr.bf16.gmra.mrb[0].mxu0 %v621
    %v657 = vpop.f32.mrb[0].mxu0
    %v658 = vadd.f32 0.0, %v657
    %v659 = vpop.f32.mrb[0].mxu0
    %v660 = vpop.f32.mrb[0].mxu0
    %v661 = vpop.f32.mrb[0].mxu0
    %662 = vdwg.mxu0
    %v664 = vcombine.high %v658, %v658
    %v666 = vunpack.c.l.s4 1966171168
    %v667 = vunpack.c.0.s8 %v666
    %v668 = vlaneseq
    %v669 = vshrl.u32 %v668, 7
    %v670 = vsub.s32 %v667, %v669
    %v671 = vrot.slane %v658, %v670
    %v673 = vunpack.c.l.s4 1966171168
    %v674 = vunpack.c.0.s8 %v673
    %v675 = vlaneseq
    %v676 = vshrl.u32 %v675, 7
    %v677 = vsub.s32 %v674, %v676
    %v678 = vrot.slane %v664, %v677
    %v679 = vcombine.high %v671, %v671
    %v680 = vcombine.high %v678, %v678
    %v682 = vunpack.c.l.s4 1966171168
    %v683 = vunpack.c.0.s8 %v682
    %v684 = vlaneseq
    %v685 = vshrl.u32 %v684, 7
    %v686 = vsub.s32 %v683, %v685
    %v687 = vrot.slane %v671, %v686
    %v689 = vunpack.c.l.s4 1966171168
    %v690 = vunpack.c.0.s8 %v689
    %v691 = vlaneseq
    %v692 = vshrl.u32 %v691, 7
    %v693 = vsub.s32 %v690, %v692
    %v694 = vrot.slane %v678, %v693
    %v696 = vunpack.c.l.s4 1966171168
    %v697 = vunpack.c.0.s8 %v696
    %v698 = vlaneseq
    %v699 = vshrl.u32 %v698, 7
    %v700 = vsub.s32 %v697, %v699
    %v701 = vrot.slane %v679, %v700
    %v703 = vunpack.c.l.s4 1966171168
    %v704 = vunpack.c.0.s8 %v703
    %v705 = vlaneseq
    %v706 = vshrl.u32 %v705, 7
    %v707 = vsub.s32 %v704, %v706
    %v708 = vrot.slane %v680, %v707
    %v709 = vcombine.high %v687, %v687
    %v710 = vcombine.high %v694, %v694
    %v711 = vcombine.high %v701, %v701
    %v712 = vcombine.high %v708, %v708
    %v713 = vlaneseq
    %v714 = vshrl.u32 %v713, 7
    %v715 = vsub.s32 0, %v714
    %v716 = vrot.slane %v687, %v715
    %v717 = vlaneseq
    %v718 = vshrl.u32 %v717, 7
    %v719 = vsub.s32 0, %v718
    %v720 = vrot.slane %v701, %v719
    %v721 = vlaneseq
    %v722 = vshrl.u32 %v721, 7
    %v723 = vsub.s32 0, %v722
    %v724 = vrot.slane %v709, %v723
    %v725 = vlaneseq
    %v726 = vshrl.u32 %v725, 7
    %v727 = vsub.s32 0, %v726
    %v728 = vrot.slane %v711, %v727
    %v729 = vlaneseq
    %v730 = vshrl.u32 %v729, 7
    %v731 = vsub.s32 0, %v730
    %v732 = vrot.slane %v694, %v731
    %v733 = vlaneseq
    %v734 = vshrl.u32 %v733, 7
    %v735 = vsub.s32 0, %v734
    %v736 = vrot.slane %v708, %v735
    %v737 = vlaneseq
    %v738 = vshrl.u32 %v737, 7
    %v739 = vsub.s32 0, %v738
    %v740 = vrot.slane %v710, %v739
    %v741 = vlaneseq
    %v742 = vshrl.u32 %v741, 7
    %v743 = vsub.s32 0, %v742
    %v744 = vrot.slane %v712, %v743
    %v753 = vadd.f32 %v539, %v716
    %v754 = vadd.f32 %v542, %v720
    %v755 = vadd.f32 %v547, %v724
    %v756 = vadd.f32 %v550, %v728
    %v757 = vadd.f32 %v555, %v732
    %v758 = vadd.f32 %v558, %v736
    %v759 = vadd.f32 %v563, %v740
    %v760 = vadd.f32 %v566, %v744
    %v762 = vlaneseq
    %v763 = vshrl.u32 %v762, 7
    %v764 = vsub.s32 0, %v763
    %v765 = vrot.slane %v475, %v764
    %v767 = vadd.f32 %v753, %v765
    %v768 = vadd.f32 %v754, %v765
    %v769 = vadd.f32 %v755, %v765
    %v770 = vadd.f32 %v756, %v765
    %v771 = vadd.f32 %v757, %v765
    %v772 = vadd.f32 %v758, %v765
    %v773 = vadd.f32 %v759, %v765
    %v774 = vadd.f32 %v760, %v765
    %v775 = vmax.f32 %v767, 0.0
    %v776 = vmax.f32 %v768, 0.0
    %v777 = vmax.f32 %v769, 0.0
    %v778 = vmax.f32 %v770, 0.0
    %v779 = vmax.f32 %v771, 0.0
    %v780 = vmax.f32 %v772, 0.0
    %v781 = vmax.f32 %v773, 0.0
    %v782 = vmax.f32 %v774, 0.0
    %v783 = vld [vmem:[%s10] sm:$0xf]
    %v784 = vld [vmem:[%s10 + $0x4] sm:$0xf]
    %v785 = vld [vmem:[%s10 + $0x8] sm:$0xf]
    %v786 = vld [vmem:[%s10 + $0xc] sm:$0xf]
    %v787 = vld [vmem:[%s11] sm:$0x1]
    %v788 = vpack.c.bf16 %v776, %v775
    %v789 = vpack.c.bf16 %v778, %v777
    %v790 = vpack.c.bf16 %v780, %v779
    %v791 = vpack.c.bf16 %v782, %v781
    %v793 = vlaneseq
    %v794 = vshrl.u32 %v793, 7
    %v795 = vsub.s32 0, %v794
    %v796 = vrot.slane %v787, %v795
    %v802 = vunpack.c.l.b16 %v783
    %v803 = vunpack.c.l.b16 %v784
    %v804 = vunpack.c.l.b16 %v785
    %v805 = vunpack.c.l.b16 %v786
    %v806 = vpack.c.b16 %v803, %v802
    %v807 = vpack.c.b16 %v805, %v804
    %v811 = vsel %vm221, %v788, 0
    %v814 = vsel %vm221, %v789, 0
    %v817 = vsel %vm221, %v790, 0
    %v820 = vsel %vm221, %v791, 0
    %822 = vmatprep.subr.bf16.mxu0 0
    %823 = vmatpush1.bf16.msra.mxu0 %v806
    %824 = vmatprep.subr.bf16.mxu0 0
    %825 = vmatpush1.bf16.msra.mxu0 %v807
    %826 = vmatprep.subr.bf16.mxu0 0
    %827 = vmatpush1.bf16.msra.mxu0 0
    %828 = vmatprep.subr.bf16.mxu0 0
    %829 = vmatpush1.bf16.msra.mxu0 0
    %830 = vmatprep.subr.bf16.mxu0 0
    %831 = vmatpush1.bf16.msra.mxu0 0
    %832 = vmatprep.subr.bf16.mxu0 0
    %833 = vmatpush1.bf16.msra.mxu0 0
    %834 = vmatprep.subr.bf16.mxu0 0
    %835 = vmatpush1.bf16.msra.mxu0 0
    %836 = vmatprep.subr.bf16.mxu0 0
    %837 = vmatpush1.bf16.msra.mxu0 0
    %838 = vmatprep.subr.bf16.mxu0 0
    %839 = vmatpush1.bf16.msra.mxu0 0
    %840 = vmatprep.subr.bf16.mxu0 0
    %841 = vmatpush1.bf16.msra.mxu0 0
    %842 = vmatprep.subr.bf16.mxu0 0
    %843 = vmatpush1.bf16.msra.mxu0 0
    %844 = vmatprep.subr.bf16.mxu0 0
    %845 = vmatpush1.bf16.msra.mxu0 0
    %846 = vmatprep.subr.bf16.mxu0 0
    %847 = vmatpush1.bf16.msra.mxu0 0
    %848 = vmatprep.subr.bf16.mxu0 0
    %849 = vmatpush1.bf16.msra.mxu0 0
    %850 = vmatprep.subr.bf16.mxu0 0
    %851 = vmatpush1.bf16.msra.mxu0 0
    %852 = vmatprep.subr.bf16.mxu0 0
    %853 = vmatpush1.bf16.msra.mxu0 0
    %854 = vmatprep.mubr.bf16.mxu0 0
    %855 = vmatmul.mubr.bf16.gmra.mrb[0].mxu0 %v811
    %v856 = vpop.f32.mrb[0].mxu0
    %v857 = vadd.f32 %v796, %v856
    %v858 = vpop.f32.mrb[0].mxu0
    %v859 = vpop.f32.mrb[0].mxu0
    %v860 = vadd.f32 %v796, %v859
    %v861 = vpop.f32.mrb[0].mxu0
    %862 = vmatprep.mubr.bf16.mxu0 0
    %863 = vmatmul.mubr.bf16.gmra.mrb[0].mxu0 %v814
    %v864 = vpop.f32.mrb[0].mxu0
    %v865 = vadd.f32 %v796, %v864
    %v866 = vpop.f32.mrb[0].mxu0
    %v867 = vpop.f32.mrb[0].mxu0
    %v868 = vadd.f32 %v796, %v867
    %v869 = vpop.f32.mrb[0].mxu0
    %870 = vmatprep.mubr.bf16.mxu0 0
    %871 = vmatmul.mubr.bf16.gmra.mrb[0].mxu0 %v817
    %v872 = vpop.f32.mrb[0].mxu0
    %v873 = vadd.f32 %v796, %v872
    %v874 = vpop.f32.mrb[0].mxu0
    %v875 = vpop.f32.mrb[0].mxu0
    %v876 = vadd.f32 %v796, %v875
    %v877 = vpop.f32.mrb[0].mxu0
    %878 = vmatprep.mubr.bf16.mxu0 0
    %879 = vmatmul.mubr.bf16.gmra.mrb[0].mxu0 %v820
    %v880 = vpop.f32.mrb[0].mxu0
    %v881 = vadd.f32 %v796, %v880
    %v882 = vpop.f32.mrb[0].mxu0
    %v883 = vpop.f32.mrb[0].mxu0
    %v884 = vadd.f32 %v796, %v883
    %v885 = vpop.f32.mrb[0].mxu0
    %886 = vdwg.mxu0
    %v887 = vmax.f32 %v857, 0.0
    %v888 = vmax.f32 %v860, 0.0
    %v889 = vmax.f32 %v865, 0.0
    %v890 = vmax.f32 %v868, 0.0
    %v891 = vmax.f32 %v873, 0.0
    %v892 = vmax.f32 %v876, 0.0
    %v893 = vmax.f32 %v881, 0.0
    %v894 = vmax.f32 %v884, 0.0
    %v895 = vld [vmem:[%s12] sm:$0xf]
    %v896 = vld [vmem:[%s12 + $0x4] sm:$0xf]
    %v897 = vld [vmem:[%s12 + $0x8] sm:$0xf]
    %v898 = vld [vmem:[%s12 + $0xc] sm:$0xf]
    %v899 = vld [vmem:[%s13] sm:$0x1]
    %v900 = vpack.c.bf16 %v888, %v887
    %v901 = vpack.c.bf16 %v890, %v889
    %v902 = vpack.c.bf16 %v892, %v891
    %v903 = vpack.c.bf16 %v894, %v893
    %v905 = vlaneseq
    %v906 = vshrl.u32 %v905, 7
    %v907 = vsub.s32 0, %v906
    %v908 = vrot.slane %v899, %v907
    %v914 = vunpack.c.l.b16 %v895
    %v915 = vunpack.c.l.b16 %v896
    %v916 = vunpack.c.l.b16 %v897
    %v917 = vunpack.c.l.b16 %v898
    %v918 = vpack.c.b16 %v915, %v914
    %v919 = vpack.c.b16 %v917, %v916
    %v923 = vsel %vm221, %v900, 0
    %v926 = vsel %vm221, %v901, 0
    %v929 = vsel %vm221, %v902, 0
    %v932 = vsel %vm221, %v903, 0
    %934 = vmatprep.subr.bf16.mxu0 0
    %935 = vmatpush1.bf16.msra.mxu0 %v918
    %936 = vmatprep.subr.bf16.mxu0 0
    %937 = vmatpush1.bf16.msra.mxu0 %v919
    %938 = vmatprep.subr.bf16.mxu0 0
    %939 = vmatpush1.bf16.msra.mxu0 0
    %940 = vmatprep.subr.bf16.mxu0 0
    %941 = vmatpush1.bf16.msra.mxu0 0
    %942 = vmatprep.subr.bf16.mxu0 0
    %943 = vmatpush1.bf16.msra.mxu0 0
    %944 = vmatprep.subr.bf16.mxu0 0
    %945 = vmatpush1.bf16.msra.mxu0 0
    %946 = vmatprep.subr.bf16.mxu0 0
    %947 = vmatpush1.bf16.msra.mxu0 0
    %948 = vmatprep.subr.bf16.mxu0 0
    %949 = vmatpush1.bf16.msra.mxu0 0
    %950 = vmatprep.subr.bf16.mxu0 0
    %951 = vmatpush1.bf16.msra.mxu0 0
    %952 = vmatprep.subr.bf16.mxu0 0
    %953 = vmatpush1.bf16.msra.mxu0 0
    %954 = vmatprep.subr.bf16.mxu0 0
    %955 = vmatpush1.bf16.msra.mxu0 0
    %956 = vmatprep.subr.bf16.mxu0 0
    %957 = vmatpush1.bf16.msra.mxu0 0
    %958 = vmatprep.subr.bf16.mxu0 0
    %959 = vmatpush1.bf16.msra.mxu0 0
    %960 = vmatprep.subr.bf16.mxu0 0
    %961 = vmatpush1.bf16.msra.mxu0 0
    %962 = vmatprep.subr.bf16.mxu0 0
    %963 = vmatpush1.bf16.msra.mxu0 0
    %964 = vmatprep.subr.bf16.mxu0 0
    %965 = vmatpush1.bf16.msra.mxu0 0
    %966 = vmatprep.mubr.bf16.mxu0 0
    %967 = vmatmul.mubr.bf16.gmra.mrb[0].mxu0 %v923
    %v968 = vpop.f32.mrb[0].mxu0
    %v969 = vadd.f32 %v908, %v968
    %v970 = vpop.f32.mrb[0].mxu0
    %v971 = vpop.f32.mrb[0].mxu0
    %v972 = vadd.f32 %v908, %v971
    %v973 = vpop.f32.mrb[0].mxu0
    %974 = vmatprep.mubr.bf16.mxu0 0
    %975 = vmatmul.mubr.bf16.gmra.mrb[0].mxu0 %v926
    %v976 = vpop.f32.mrb[0].mxu0
    %v977 = vadd.f32 %v908, %v976
    %v978 = vpop.f32.mrb[0].mxu0
    %v979 = vpop.f32.mrb[0].mxu0
    %v980 = vadd.f32 %v908, %v979
    %v981 = vpop.f32.mrb[0].mxu0
    %982 = vmatprep.mubr.bf16.mxu0 0
    %983 = vmatmul.mubr.bf16.gmra.mrb[0].mxu0 %v929
    %v984 = vpop.f32.mrb[0].mxu0
    %v985 = vadd.f32 %v908, %v984
    %v986 = vpop.f32.mrb[0].mxu0
    %v987 = vpop.f32.mrb[0].mxu0
    %v988 = vadd.f32 %v908, %v987
    %v989 = vpop.f32.mrb[0].mxu0
    %990 = vmatprep.mubr.bf16.mxu0 0
    %991 = vmatmul.mubr.bf16.gmra.mrb[0].mxu0 %v932
    %v992 = vpop.f32.mrb[0].mxu0
    %v993 = vadd.f32 %v908, %v992
    %v994 = vpop.f32.mrb[0].mxu0
    %v995 = vpop.f32.mrb[0].mxu0
    %v996 = vadd.f32 %v908, %v995
    %v997 = vpop.f32.mrb[0].mxu0
    %998 = vdwg.mxu0
    %v999 = vsel %vm221, %v969, -inf
    %v1000 = vrot.slane %v999, 4
    %v1001 = vmax.f32 %v999, %v1000
    %v1002 = vrot.slane %v1001, 2
    %v1003 = vmax.f32 %v1001, %v1002
    %v1004 = vrot.slane %v1003, 1
    %v1005 = vmax.f32 %v1003, %v1004
    %v1006 = vsel %vm221, %v972, -inf
    %v1007 = vrot.slane %v1006, 4
    %v1008 = vmax.f32 %v1006, %v1007
    %v1009 = vrot.slane %v1008, 2
    %v1010 = vmax.f32 %v1008, %v1009
    %v1011 = vrot.slane %v1010, 1
    %v1012 = vmax.f32 %v1010, %v1011
    %v1013 = vsel %vm221, %v977, -inf
    %v1014 = vrot.slane %v1013, 4
    %v1015 = vmax.f32 %v1013, %v1014
    %v1016 = vrot.slane %v1015, 2
    %v1017 = vmax.f32 %v1015, %v1016
    %v1018 = vrot.slane %v1017, 1
    %v1019 = vmax.f32 %v1017, %v1018
    %v1020 = vsel %vm221, %v980, -inf
    %v1021 = vrot.slane %v1020, 4
    %v1022 = vmax.f32 %v1020, %v1021
    %v1023 = vrot.slane %v1022, 2
    %v1024 = vmax.f32 %v1022, %v1023
    %v1025 = vrot.slane %v1024, 1
    %v1026 = vmax.f32 %v1024, %v1025
    %v1027 = vsel %vm221, %v985, -inf
    %v1028 = vrot.slane %v1027, 4
    %v1029 = vmax.f32 %v1027, %v1028
    %v1030 = vrot.slane %v1029, 2
    %v1031 = vmax.f32 %v1029, %v1030
    %v1032 = vrot.slane %v1031, 1
    %v1033 = vmax.f32 %v1031, %v1032
    %v1034 = vsel %vm221, %v988, -inf
    %v1035 = vrot.slane %v1034, 4
    %v1036 = vmax.f32 %v1034, %v1035
    %v1037 = vrot.slane %v1036, 2
    %v1038 = vmax.f32 %v1036, %v1037
    %v1039 = vrot.slane %v1038, 1
    %v1040 = vmax.f32 %v1038, %v1039
    %v1041 = vsel %vm221, %v993, -inf
    %v1042 = vrot.slane %v1041, 4
    %v1043 = vmax.f32 %v1041, %v1042
    %v1044 = vrot.slane %v1043, 2
    %v1045 = vmax.f32 %v1043, %v1044
    %v1046 = vrot.slane %v1045, 1
    %v1047 = vmax.f32 %v1045, %v1046
    %v1048 = vsel %vm221, %v996, -inf
    %v1049 = vrot.slane %v1048, 4
    %v1050 = vmax.f32 %v1048, %v1049
    %v1051 = vrot.slane %v1050, 2
    %v1052 = vmax.f32 %v1050, %v1051
    %v1053 = vrot.slane %v1052, 1
    %v1054 = vmax.f32 %v1052, %v1053
    %v1063 = vsel %vm593, %v1012, %v1005
    %v1064 = vsel %vm595, %v1019, %v1063
    %v1065 = vsel %vm597, %v1026, %v1064
    %v1066 = vsel %vm599, %v1033, %v1065
    %v1067 = vsel %vm601, %v1040, %v1066
    %v1068 = vsel %vm603, %v1047, %v1067
    %v1069 = vsel %vm605, %v1054, %v1068
    %1071 = vst.msk [vmem:[#allocation8] sm:$0xff] %vm221, %v1069
    // Predicated region
    $region70: #{tpu_custom_call.1} parent=1 // pred_check
      _
    $region71: #{tpu_custom_call.1} parent=1 // pred_check_branch
      %1073 = sbr.rel (0) target = $region73
    $region72: #{tpu_custom_call.1} parent=1 // pred_region
      %s1075 = ssub.s32 128, 128
      %1076 = vsyncadd [#allocation4], %s1075
      %s1078 = sshll.u32 [#allocation8], 4
      %s1079 = int_to_ptr.vmem [resolvable:$true] %s1078
      %1081 = dma.vmem_to_hbm [thread:$0]  %s1079, 128, %s14, [#allocation4]
    $region73: #{tpu_custom_call.1} parent=1 // pred_fallthru
      _
    // Predicated region
    $region74: #{tpu_custom_call.1} parent=1 // pred_check
      _
    $region75: #{tpu_custom_call.1} parent=1 // pred_check_branch
      %1083 = sbr.rel (0) target = $region77
    $region76: #{tpu_custom_call.1} parent=1 // pred_region
      %1084 = dma.done [#allocation4], 128
    $region77: #{tpu_custom_call.1} parent=1 // pred_fallthru
      _
    %1085 = vsyncpa [#allocation3], 1
    %1086 = vsyncpa [#allocation6], 1
    %1087 = vsyncpa [#allocation4], 1

</llo_original>
